<compile_context>
chip_gen: v7x
topology: tpu7x:2x2x1
jax: 0.10.0
libtpu: 0.0.40
codegen_flags: <defaults>
</compile_context>

<pallas_src>
import functools

import jax
import jax.numpy as jnp
from jax.experimental import pallas as pl
from jax.experimental.pallas import tpu as pltpu


# ----------------------------------------------------------------------------- kernel
def _spectral_matmul_kernel(x_ref, w_ref, o_ref):
    """One (mode_blk, b_blk, K) x (mode_blk, K, N) batched matmul on the MXU.

    The complex multiply is already folded into the [[wr, wi], [-wi, wr]] weight layout,
    so each grid step is a single MXU stream with f32 accumulation and lane-dense stores.
    """
    o_ref[...] = jnp.einsum(
        "mbk,mkn->mbn",
        x_ref[...],
        w_ref[...],
        preferred_element_type=jnp.float32,
    ).astype(o_ref.dtype)


# ------------------------------------------------------------------------ tile chooser
def _divisors(n):
    ds = set()
    i = 1
    while i * i <= n:
        if n % i == 0:
            ds.add(i)
            ds.add(n // i)
        i += 1
    return sorted(ds)


def _choose_tiles(n_modes, batch, k_dim, n_dim, in_itemsize, out_itemsize,
                  vmem_budget_bytes=24 * 1024 * 1024):
    """Pick (mode_blk, b_blk) so double-buffered tiles fit a portable VMEM budget.

    Channel axes (k_dim / n_dim) are never tiled. b_blk must be a multiple of 8 or equal
    to the full batch (TPU sublane rule); mode_blk divides n_modes so no padding / ragged
    edges are needed. Prefers choices that leave >= 2 blocks on a parallel grid axis so
    v7x's two TensorCores both get work (v5e/v6e are single-TC and don't care).
    """
    b_cands = sorted({d for d in _divisors(batch)
                      if (d % 8 == 0 or d == batch) and d <= 1024})
    if not b_cands:
        b_cands = [batch]
    m_cands = _divisors(n_modes)

    def footprint(mb, bb):
        x_t = mb * bb * k_dim * in_itemsize
        w_t = mb * k_dim * n_dim * in_itemsize
        o_t = mb * bb * n_dim * out_itemsize
        return 2 * (x_t + w_t + o_t)  # double-buffered input/output tiles

    best = None          # largest tile that fits
    best_split = None    # largest tile that fits AND yields >= 2 grid blocks
    for mb in m_cands:
        for bb in b_cands:
            if footprint(mb, bb) > vmem_budget_bytes:
                continue
            key = (bb, mb)  # grow batch first (weight-tile reuse), then modes
            if best is None or key > best[0]:
                best = (key, (mb, bb))
            if (n_modes // mb) * (batch // bb) >= 2 and \
                    (best_split is None or key > best_split[0]):
                best_split = (key, (mb, bb))
    if best_split is not None:
        return best_split[1]
    if best is not None:
        return best[1]
    return m_cands[0], b_cands[0]  # degenerate fallback: smallest valid tiles


# --------------------------------------------------------------------------- pallas op
def spectral_compl_mul_pallas(x_pack, w_pack):
    """Batched matmul: x_pack (M, B, K) @ w_pack (M, K, N) -> (M, B, N) float32."""
    M, B, K = x_pack.shape
    Nl = w_pack.shape[2]

    mode_blk, b_blk = _choose_tiles(M, B, K, Nl, x_pack.dtype.itemsize, 4)

    # Grid order: mode OUTER, batch INNER so the weight block index (m, 0, 0) changes
    # only on the outer axis -> each weight tile is fetched once per mode block.
    grid = (M // mode_blk, B // b_blk)

    flops = 2 * M * B * K * Nl
    bytes_accessed = (x_pack.dtype.itemsize * M * B * K
                      + w_pack.dtype.itemsize * M * K * Nl
                      + 4 * M * B * Nl)

    return pl.pallas_call(
        _spectral_matmul_kernel,
        out_shape=jax.ShapeDtypeStruct((M, B, Nl), jnp.float32),
        grid=grid,
        in_specs=[
            pl.BlockSpec((mode_blk, b_blk, K), lambda m, b: (m, b, 0)),
            pl.BlockSpec((mode_blk, K, Nl), lambda m, b: (m, 0, 0)),
        ],
        out_specs=pl.BlockSpec((mode_blk, b_blk, Nl), lambda m, b: (m, b, 0)),
        compiler_params=pltpu.CompilerParams(
            dimension_semantics=("parallel", "parallel"),
            vmem_limit_bytes=48 * 1024 * 1024,  # < 64 MiB physical on v7x, raises v5e's 16 MiB default
        ),
        cost_estimate=pl.CostEstimate(
            flops=flops, transcendentals=0, bytes_accessed=bytes_accessed),
    )(x_pack, w_pack)


# ------------------------------------------------------------------------ jitted forward
@functools.partial(jax.jit,
                   static_argnames=("out_channels", "modes", "group", "cout_pad"))
def _spectral_conv1d_forward(x, w_group, *, out_channels, modes, group, cout_pad):
    B, c_in, N = x.shape
    nfreq = N // 2 + 1
    assert modes <= nfreq, "modes must be <= N // 2 + 1"
    g = group
    modes_g = modes // g
    compute_dtype = w_group.dtype

    x_ft = jnp.fft.rfft(x, axis=-1)              # (B, Cin, nfreq) complex64
    xk = x_ft[:, :, :modes]                      # (B, Cin, modes)

    # Lane-packed activations: per mode the packed row is [xr | xi] along channels,
    # and g consecutive modes are concatenated into the lane axis.
    x2 = jnp.concatenate([jnp.real(xk), jnp.imag(xk)], axis=1)   # (B, 2*Cin, modes)
    x3 = x2.reshape(B, 2 * c_in, modes_g, g)
    x_grouped = jnp.transpose(x3, (2, 0, 3, 1)).reshape(modes_g, B, g * 2 * c_in)
    x_grouped = x_grouped.astype(compute_dtype)

    out = spectral_compl_mul_pallas(x_grouped, w_group)   # (modes_g, B, g*2*cout_pad) f32

    out = out.reshape(modes_g, B, g, 2, cout_pad)
    out_r = out[..., 0, :out_channels]
    out_i = out[..., 1, :out_channels]
    out_k = (out_r + 1j * out_i).astype(jnp.complex64)     # (modes_g, B, g, Cout)
    out_k = jnp.transpose(out_k, (1, 3, 0, 2)).reshape(B, out_channels, modes)

    # irfft zero-pads the truncated frequency axis itself -> no zeros+scatter needed.
    return jnp.fft.irfft(out_k, n=N, axis=-1)              # (B, Cout, N) float32


# --------------------------------------------------------------------------- the module
class SpectralConv1dFast:
    """JAX/Pallas port of SpectralConv1d_fast."""

    def __init__(self, in_channels, out_channels, modes, key,
                 compute_dtype=jnp.bfloat16):
        self.in_channels = in_channels
        self.out_channels = out_channels
        self.modes = modes
        self.compute_dtype = compute_dtype
        scale = 1.0 / (in_channels * out_channels)
        kr, ki = jax.random.split(key)
        # torch.rand(..., dtype=cfloat): real & imag ~ U[0, 1); deterministic init here.
        self.w_real = scale * jax.random.uniform(
            kr, (in_channels, out_channels, modes), dtype=jnp.float32)
        self.w_imag = scale * jax.random.uniform(
            ki, (in_channels, out_channels, modes), dtype=jnp.float32)

        # ---- static weight packing, hoisted out of the forward pass -------------------
        # If 2*Cout < 128 lanes: (a) zero-pad Cout to the next power of two, (b) pack g
        # modes into the lane axis with a block-diagonal weight, so kernel output rows
        # approach a full 128-lane slab (avoids masked vst.msk partial stores).
        two_cout = 2 * out_channels
        if two_cout >= 128:
            cout_pad = out_channels
        else:
            cout_pad = max(1, int(pl.next_power_of_2(out_channels)))
        g_max = max(1, 128 // (2 * cout_pad))
        g = max(d for d in range(1, modes + 1) if modes % d == 0 and d <= g_max)
        self.group = g
        self.cout_pad = cout_pad

        wr = jnp.transpose(self.w_real, (2, 0, 1))   # (modes, Cin, Cout)
        wi = jnp.transpose(self.w_imag, (2, 0, 1))
        if cout_pad != out_channels:
            pad = ((0, 0), (0, 0), (0, cout_pad - out_channels))
            wr = jnp.pad(wr, pad)
            wi = jnp.pad(wi, pad)
        # Per-mode packed weight:  [xr | xi] @ [[wr, wi], [-wi, wr]] = [out_r | out_i]
        top = jnp.concatenate([wr, wi], axis=2)      # (modes, Cin, 2*cout_pad)
        bot = jnp.concatenate([-wi, wr], axis=2)     # (modes, Cin, 2*cout_pad)
        w_pack = jnp.concatenate([top, bot], axis=1)  # (modes, 2*Cin, 2*cout_pad)

        # Block-diagonal grouping of g modes into the lane axis.
        modes_g = modes // g
        wp = w_pack.reshape(modes_g, g, 2 * in_channels, 2 * cout_pad)
        eye = jnp.eye(g, dtype=wp.dtype)
        w_group = eye[None, :, None, :, None] * wp[:, :, :, None, :]
        self.w_group = w_group.reshape(
            modes_g, g * 2 * in_channels, g * 2 * cout_pad).astype(compute_dtype)

    def __call__(self, x):
        # x: (B, C_in, N) float32
        assert x.shape[1] == self.in_channels
        return _spectral_conv1d_forward(
            x, self.w_group,
            out_channels=self.out_channels, modes=self.modes,
            group=self.group, cout_pad=self.cout_pad)


# --------------------------------------------------------------------------- reference
def _reference_forward(layer, x):
    """Pure-jnp mirror of the PyTorch forward (correctness anchor)."""
    B, _, N = x.shape
    nfreq = N // 2 + 1
    x_ft = jnp.fft.rfft(x, axis=-1)
    w = (layer.w_real + 1j * layer.w_imag).astype(jnp.complex64)
    out_k = jnp.einsum('bix,iox->box', x_ft[:, :, :layer.modes], w)
    out_ft = jnp.zeros((B, layer.out_channels, nfreq), dtype=jnp.complex64)
    out_ft = out_ft.at[:, :, :layer.modes].set(out_k)
    return jnp.fft.irfft(out_ft, n=N, axis=-1)


def _rel_err(a, b):
    return float(jnp.linalg.norm(a - b) / (jnp.linalg.norm(b) + 1e-12))


if __name__ == "__main__":
    key = jax.random.PRNGKey(0)
    k_x, k_w = jax.random.split(key)

    B, C_in, C_out, N, modes = 2, 4, 4, 16, 4
    x = jax.random.normal(k_x, (B, C_in, N), dtype=jnp.float32)

    # float32 path (tighter check against the spec-mirroring reference)
    layer_f32 = SpectralConv1dFast(C_in, C_out, modes, k_w, compute_dtype=jnp.float32)
    y_f32 = jax.block_until_ready(layer_f32(x))
    y_ref = jax.block_until_ready(_reference_forward(layer_f32, x))
    assert y_f32.shape == (B, C_out, N)
    assert _rel_err(y_f32, y_ref) < 2e-2, "f32 path mismatch vs reference"

    # bfloat16 (default) path — activations/weights bf16, f32 accumulation
    layer_bf16 = SpectralConv1dFast(C_in, C_out, modes, k_w)
    y_bf16 = jax.block_until_ready(layer_bf16(x))
    assert y_bf16.shape == (B, C_out, N)
    assert _rel_err(y_bf16, y_ref) < 5e-2, "bf16 path mismatch vs reference"

    print("KERNEL_OK")
</pallas_src>

<mosaic_0001>
module attributes {stable_mosaic.version = 11 : i64} {
  func.func @_spectral_matmul_kernel(%arg0: i32, %arg1: i32, %arg2: memref<1x2x32xf32, #tpu.memory_space<vmem>>, %arg3: memref<1x32x32xf32, #tpu.memory_space<vmem>>, %arg4: memref<1x2x32xf32, #tpu.memory_space<vmem>>) attributes {dimension_semantics = [#tpu.dimension_semantics<parallel>, #tpu.dimension_semantics<parallel>], iteration_bounds = array<i64: 1, 1>, scalar_prefetch = 0 : i64, scratch_operands = 0 : i64, tpu.core_type = #tpu.core_type<tc>, window_params = [{transform_indices = @transform_0, window_bounds = array<i64: 1, 2, 32>}, {transform_indices = @transform_1, window_bounds = array<i64: 1, 32, 32>}, {transform_indices = @transform_2, window_bounds = array<i64: 1, 2, 32>}]} {
    %c0 = arith.constant 0 : index
    %c0_0 = arith.constant 0 : index
    %c0_1 = arith.constant 0 : index
    %0 = vector.load %arg2[%c0, %c0_0, %c0_1] : memref<1x2x32xf32, #tpu.memory_space<vmem>>, vector<1x2x32xf32>
    %c0_2 = arith.constant 0 : index
    %c0_3 = arith.constant 0 : index
    %c0_4 = arith.constant 0 : index
    %1 = vector.load %arg3[%c0_2, %c0_3, %c0_4] : memref<1x32x32xf32, #tpu.memory_space<vmem>>, vector<1x32x32xf32>
    "tpu.trace_start"() <{level = 10 : i32, message = "mbk,mkn->mbn"}> : () -> ()
    %cst = arith.constant dense<0.000000e+00> : vector<1x2x32xf32>
    %2 = tpu.matmul %0, %1, %cst {dimension_numbers = #tpu.dot_dimension_numbers<[2], [1], [1], [2], [0, 0, 0, 1, 1, 2], [0], [0]>} : vector<1x2x32xf32>, vector<1x32x32xf32>, vector<1x2x32xf32> -> vector<1x2x32xf32>
    "tpu.trace_stop"() : () -> ()
    %c0_5 = arith.constant 0 : index
    %c0_6 = arith.constant 0 : index
    %c0_7 = arith.constant 0 : index
    %3 = vector.load %arg4[%c0_5, %c0_6, %c0_7] : memref<1x2x32xf32, #tpu.memory_space<vmem>>, vector<1x2x32xf32>
    tpu.vector_store %arg4[%c0_5, %c0_6, %c0_7], %2 {strides = array<i32>} : memref<1x2x32xf32, #tpu.memory_space<vmem>>, vector<1x2x32xf32>,
    return
  }
  func.func @transform_0(%arg0: i32, %arg1: i32) -> (i32, i32, i32) {
    %c0_i32 = arith.constant 0 : i32
    %c0_i32_0 = arith.constant 0 : i32
    return %arg0, %arg1, %c0_i32 : i32, i32, i32
  }
  func.func @transform_1(%arg0: i32, %arg1: i32) -> (i32, i32, i32) {
    %c0_i32 = arith.constant 0 : i32
    %c0_i32_0 = arith.constant 0 : i32
    %c0_i32_1 = arith.constant 0 : i32
    return %arg0, %c0_i32, %c0_i32_0 : i32, i32, i32
  }
  func.func @transform_2(%arg0: i32, %arg1: i32) -> (i32, i32, i32) {
    %c0_i32 = arith.constant 0 : i32
    %c0_i32_0 = arith.constant 0 : i32
    return %arg0, %arg1, %c0_i32 : i32, i32, i32
  }
}

</mosaic_0001>

<llo_original>
// kernel: reverse.0
$region0: #{reverse.0}
  %s0 = inlined_call_operand.vmem [shape: f32[2,4,7], index: 0, kind: input, shape index: {}]
  %s1 = inlined_call_operand.vmem [shape: f32[2,4,7], index: 1, kind: output, shape index: {}]
  %v2 = vlaneseq
  %v3 = vsub.s32 6, %v2
  %4 = vset.pattern.permute.xlu0 %v3
  $region1: #{reverse.0} parent=0
    #allocation0 [shape = 'u8[8192]{0}', space=vmem, size = 0x2000, scoped, tag = 'operand span for operand 0']
    #allocation1 [shape = 'u8[4096]{0}', space=vmem, size = 0x1000, scoped, tag = 'packed  for operand 0']
    #allocation2 [shape = 'u8[8192]{0}', space=vmem, size = 0x2000, scoped, tag = 'operand span for operand 1']
    #allocation3 [shape = 'u8[4096]{0}', space=vmem, size = 0x1000, scoped, tag = 'packed  for operand 1']
    // Predicated region
    $region2: #{reverse.0} parent=1 // pred_check
      _
    $region3: #{reverse.0} parent=1 // pred_check_branch
      %6 = sbr.rel (0) target = $region5
    $region4: #{reverse.0} parent=1 // pred_region
      // Predicated region
      $region6: #{reverse.0} parent=4 // pred_check
        _
      $region7: #{reverse.0} parent=4 // pred_check_branch
        %8 = sbr.rel target = $region9
      $region8: #{reverse.0} parent=4 // pred_region
        // Predicated region
        $region21: #{reverse.0} parent=8 // pred_check
          _
        $region22: #{reverse.0} parent=8 // pred_check_branch
          %25 = sbr.rel (0) target = $region24
        $region23: #{reverse.0} parent=8 // pred_region
          loop: start=0, step=1, limit=1
          $region25: #{reverse.0} parent=23 // loop_pre_header
            _
          $region26: #{reverse.0} parent=23 // loop_header
            %s27 = sphi 0, %s31
            %p28 = scmp.ge.s32.totalorder %s27, 1
            %s32 = sphi %s0, %s0
            %s33 = sphi [#allocation1], [#allocation1]
          $region27: #{reverse.0} parent=23 // loop_header_branch
            %30 = sbr.rel (%p28) target = $region31
          $region28: #{reverse.0} parent=23 // loop_body
            _
          $region29: #{reverse.0} parent=23 // loop_footer
            %s31 = sadd.s32 1, %s27
          $region30: #{reverse.0} parent=23 // loop_footer_branch
            %26 = sbr.rel target = $region26
          $region31: #{reverse.0} parent=23 // loop_exit
            _
          loop: start=0, step=1, limit=1
          $region32: #{reverse.0} parent=23 // loop_pre_header
            _
          $region33: #{reverse.0} parent=23 // loop_header
            %s36 = sphi 0, %s40
            %p37 = scmp.ge.s32.totalorder %s36, 1
            %s41 = sphi %s0, %s0
            %s42 = sphi [#allocation1], [#allocation1]
          $region34: #{reverse.0} parent=23 // loop_header_branch
            %39 = sbr.rel (%p37) target = $region38
          $region35: #{reverse.0} parent=23 // loop_body
            %v43 = vld [vmem:[%s41] sm:$0xf]
            %44 = vst [vmem:[%s42] sm:$0xf] %v43
            %v45 = vld [vmem:[%s41 + $0x4] sm:$0xf]
            %46 = vst [vmem:[%s42 + $0x4] sm:$0xf] %v45
          $region36: #{reverse.0} parent=23 // loop_footer
            %s40 = sadd.s32 1, %s36
          $region37: #{reverse.0} parent=23 // loop_footer_branch
            %35 = sbr.rel target = $region33
          $region38: #{reverse.0} parent=23 // loop_exit
            _
        $region24: #{reverse.0} parent=8 // pred_fallthru
          _
      $region9: #{reverse.0} parent=4 // pred_fallthru
        _
      // Predicated region
      $region10: #{reverse.0} parent=4 // pred_check
        _
      $region11: #{reverse.0} parent=4 // pred_check_branch
        %10 = sbr.rel (0) target = $region13
      $region12: #{reverse.0} parent=4 // pred_region
        loop: start=0, step=1, limit=1
        $region14: #{reverse.0} parent=12 // loop_pre_header
          _
        $region15: #{reverse.0} parent=12 // loop_header
          %s13 = sphi 0, %s17
          %p14 = scmp.ge.s32.totalorder %s13, 1
          %s18 = sphi %s0, %s0
          %s19 = sphi [#allocation1], [#allocation1]
        $region16: #{reverse.0} parent=12 // loop_header_branch
          %16 = sbr.rel (%p14) target = $region20
        $region17: #{reverse.0} parent=12 // loop_body
          %v20 = vld [vmem:[%s18] sm:$0xf]
          %21 = vst [vmem:[%s19] sm:$0xf] %v20
          %v22 = vld [vmem:[%s18 + $0x4] sm:$0xf]
          %23 = vst [vmem:[%s19 + $0x4] sm:$0xf] %v22
        $region18: #{reverse.0} parent=12 // loop_footer
          %s17 = sadd.s32 1, %s13
        $region19: #{reverse.0} parent=12 // loop_footer_branch
          %12 = sbr.rel target = $region15
        $region20: #{reverse.0} parent=12 // loop_exit
          _
      $region13: #{reverse.0} parent=4 // pred_fallthru
        _
    $region5: #{reverse.0} parent=1 // pred_fallthru
      _
    %47 = vnop
    %s49 = sshllo.u32 0, 4
    %s50 = scalar_lea.vmem [#allocation1], 4
    %v51 = vld [vmem:[%s50] sm:%s49]
    %s52 = scalar_lea.vmem [#allocation0], 8
    %53 = vst [vmem:[%s52] sm:%s49] %v51
    %v54 = vld [vmem:[#allocation1] sm:%s49]
    %55 = vst [vmem:[#allocation0] sm:%s49] %v54
    %v56 = vld [vmem:[#allocation0] sm:$0xff]
    %57 = vperm.xlu0 %4, %v56
    %v58 = vpop.permute.xlu0 %57
    %59 = vst [vmem:[#allocation2] sm:$0xff] %v58
    %s60 = scalar_lea.vmem [#allocation2], 8
    %s61 = scalar_lea.vmem [#allocation0], 8
    %v62 = vld [vmem:[%s61] sm:$0xff]
    %63 = vperm.xlu0 %4, %v62
    %v64 = vpop.permute.xlu0 %63
    %65 = vst [vmem:[%s60] sm:$0xff] %v64
    %s67 = sshllo.u32 0, 4
    %v69 = vld [vmem:[#allocation2] sm:%s67]
    %s70 = sshllo.u32 0, 4
    %71 = vst [vmem:[#allocation3] sm:%s70] %v69
    %s72 = scalar_lea.vmem [#allocation2], 8
    %v73 = vld [vmem:[%s72] sm:%s67]
    %s74 = sshllo.u32 0, 4
    %s75 = scalar_lea.vmem [#allocation3], 4
    %76 = vst [vmem:[%s75] sm:%s74] %v73
    // Predicated region
    $region39: #{reverse.0} parent=1 // pred_check
      _
    $region40: #{reverse.0} parent=1 // pred_check_branch
      %78 = sbr.rel (0) target = $region42
    $region41: #{reverse.0} parent=1 // pred_region
      // Predicated region
      $region43: #{reverse.0} parent=41 // pred_check
        _
      $region44: #{reverse.0} parent=41 // pred_check_branch
        %80 = sbr.rel target = $region46
      $region45: #{reverse.0} parent=41 // pred_region
        // Predicated region
        $region58: #{reverse.0} parent=45 // pred_check
          _
        $region59: #{reverse.0} parent=45 // pred_check_branch
          %97 = sbr.rel (0) target = $region61
        $region60: #{reverse.0} parent=45 // pred_region
          loop: start=0, step=1, limit=1
          $region62: #{reverse.0} parent=60 // loop_pre_header
            _
          $region63: #{reverse.0} parent=60 // loop_header
            %s99 = sphi 0, %s103
            %p100 = scmp.ge.s32.totalorder %s99, 1
            %s104 = sphi [#allocation3], [#allocation3]
            %s105 = sphi %s1, %s1
          $region64: #{reverse.0} parent=60 // loop_header_branch
            %102 = sbr.rel (%p100) target = $region68
          $region65: #{reverse.0} parent=60 // loop_body
            _
          $region66: #{reverse.0} parent=60 // loop_footer
            %s103 = sadd.s32 1, %s99
          $region67: #{reverse.0} parent=60 // loop_footer_branch
            %98 = sbr.rel target = $region63
          $region68: #{reverse.0} parent=60 // loop_exit
            _
          loop: start=0, step=1, limit=1
          $region69: #{reverse.0} parent=60 // loop_pre_header
            _
          $region70: #{reverse.0} parent=60 // loop_header
            %s108 = sphi 0, %s112
            %p109 = scmp.ge.s32.totalorder %s108, 1
            %s113 = sphi [#allocation3], [#allocation3]
            %s114 = sphi %s1, %s1
          $region71: #{reverse.0} parent=60 // loop_header_branch
            %111 = sbr.rel (%p109) target = $region75
          $region72: #{reverse.0} parent=60 // loop_body
            %v115 = vld [vmem:[%s113] sm:$0xf]
            %116 = vst [vmem:[%s114] sm:$0xf] %v115
            %v117 = vld [vmem:[%s113 + $0x4] sm:$0xf]
            %118 = vst [vmem:[%s114 + $0x4] sm:$0xf] %v117
          $region73: #{reverse.0} parent=60 // loop_footer
            %s112 = sadd.s32 1, %s108
          $region74: #{reverse.0} parent=60 // loop_footer_branch
            %107 = sbr.rel target = $region70
          $region75: #{reverse.0} parent=60 // loop_exit
            _
        $region61: #{reverse.0} parent=45 // pred_fallthru
          _
      $region46: #{reverse.0} parent=41 // pred_fallthru
        _
      // Predicated region
      $region47: #{reverse.0} parent=41 // pred_check
        _
      $region48: #{reverse.0} parent=41 // pred_check_branch
        %82 = sbr.rel (0) target = $region50
      $region49: #{reverse.0} parent=41 // pred_region
        loop: start=0, step=1, limit=1
        $region51: #{reverse.0} parent=49 // loop_pre_header
          _
        $region52: #{reverse.0} parent=49 // loop_header
          %s85 = sphi 0, %s89
          %p86 = scmp.ge.s32.totalorder %s85, 1
          %s90 = sphi [#allocation3], [#allocation3]
          %s91 = sphi %s1, %s1
        $region53: #{reverse.0} parent=49 // loop_header_branch
          %88 = sbr.rel (%p86) target = $region57
        $region54: #{reverse.0} parent=49 // loop_body
          %v92 = vld [vmem:[%s90] sm:$0xf]
          %93 = vst [vmem:[%s91] sm:$0xf] %v92
          %v94 = vld [vmem:[%s90 + $0x4] sm:$0xf]
          %95 = vst [vmem:[%s91 + $0x4] sm:$0xf] %v94
        $region55: #{reverse.0} parent=49 // loop_footer
          %s89 = sadd.s32 1, %s85
        $region56: #{reverse.0} parent=49 // loop_footer_branch
          %84 = sbr.rel target = $region52
        $region57: #{reverse.0} parent=49 // loop_exit
          _
      $region50: #{reverse.0} parent=41 // pred_fallthru
        _
    $region42: #{reverse.0} parent=1 // pred_fallthru
      _
    %119 = vnop

// kernel: _spectral_conv1d_forward.1
$region0: #{_spectral_conv1d_forward.1}
  #allocation0 [shape = 'u32[]', space=smem, size = 0x4, offset = 0x4, fixed_abs, tag = 'smem constant byte address 0x4 - core index']
  #allocation1 [shape = 'u32[144,128]{1,0:T(1,128)}', space=vmem, size = 0x12000, scoped, tag = 'internal scratch']
  %s0 = inlined_call_operand.vmem [shape: f32[1,2,32], index: 0, kind: input, shape index: {}]
  %s1 = inlined_call_operand.vmem [shape: f32[1,32,32], index: 1, kind: input, shape index: {}]
  %s2 = inlined_call_operand.vmem [shape: f32[1,2,32], index: 2, kind: output, shape index: {}]
  %s3 = sld [smem:[#allocation0]]
  $region18: #{_spectral_conv1d_forward.1} parent=0
    _
  %s5 = ssub.s32 1, %s3
  %s6 = scalar_select 0, %s5, %s3
  // Predicated region
  $region2: #{_spectral_conv1d_forward.1} parent=0 // pred_check
    _
  $region3: #{_spectral_conv1d_forward.1} parent=0 // pred_check_branch
    %8 = sbr.rel (0) target = $region5
  $region4: #{_spectral_conv1d_forward.1} parent=0 // pred_region
    _
  $region5: #{_spectral_conv1d_forward.1} parent=0 // pred_fallthru
    _
  // Predicated region
  $region6: #{_spectral_conv1d_forward.1} parent=0 // pred_check
    _
  $region7: #{_spectral_conv1d_forward.1} parent=0 // pred_check_branch
    %10 = sbr.rel (0) target = $region9
  $region8: #{_spectral_conv1d_forward.1} parent=0 // pred_region
    _
  $region9: #{_spectral_conv1d_forward.1} parent=0 // pred_fallthru
    _
  %v11 = vld [vmem:[%s0] sm:$0x3]
  %v12 = vld [vmem:[%s1] sm:$0xff]
  %v13 = vld [vmem:[%s1 + $0x8] sm:$0xff]
  %v14 = vld [vmem:[%s1 + $0x10] sm:$0xff]
  %v15 = vld [vmem:[%s1 + $0x18] sm:$0xff]
  %vm16 = vcmask 261120
  %v18 = vsel %vm16, %v11, 0
  %20 = vmatprep.subr.mxu0 0.0
  %21 = vmatpush1.msra.mxu0 %v12
  %22 = vmatprep.subr.mxu0 0.0
  %23 = vmatpush1.msra.mxu0 %v13
  %24 = vmatprep.subr.mxu0 0.0
  %25 = vmatpush1.msra.mxu0 %v14
  %26 = vmatprep.subr.mxu0 0.0
  %27 = vmatpush1.msra.mxu0 %v15
  %28 = vmatprep.subr.mxu0 0.0
  %29 = vmatpush1.msra.mxu0 0.0
  %30 = vmatprep.subr.mxu0 0.0
  %31 = vmatpush1.msra.mxu0 0.0
  %32 = vmatprep.subr.mxu0 0.0
  %33 = vmatpush1.msra.mxu0 0.0
  %34 = vmatprep.subr.mxu0 0.0
  %35 = vmatpush1.msra.mxu0 0.0
  %36 = vmatprep.subr.mxu0 0.0
  %37 = vmatpush1.msra.mxu0 0.0
  %38 = vmatprep.subr.mxu0 0.0
  %39 = vmatpush1.msra.mxu0 0.0
  %40 = vmatprep.subr.mxu0 0.0
  %41 = vmatpush1.msra.mxu0 0.0
  %42 = vmatprep.subr.mxu0 0.0
  %43 = vmatpush1.msra.mxu0 0.0
  %44 = vmatprep.subr.mxu0 0.0
  %45 = vmatpush1.msra.mxu0 0.0
  %46 = vmatprep.subr.mxu0 0.0
  %47 = vmatpush1.msra.mxu0 0.0
  %48 = vmatprep.subr.mxu0 0.0
  %49 = vmatpush1.msra.mxu0 0.0
  %50 = vmatprep.subr.mxu0 0.0
  %51 = vmatpush1.msra.mxu0 0.0
  %52 = vmatprep.subr.mxu0 0.0
  %53 = vmatpush1.msra.mxu0 0.0
  %54 = vmatprep.subr.mxu0 0.0
  %55 = vmatpush1.msra.mxu0 0.0
  %56 = vmatprep.subr.mxu0 0.0
  %57 = vmatpush1.msra.mxu0 0.0
  %58 = vmatprep.subr.mxu0 0.0
  %59 = vmatpush1.msra.mxu0 0.0
  %60 = vmatprep.subr.mxu0 0.0
  %61 = vmatpush1.msra.mxu0 0.0
  %62 = vmatprep.subr.mxu0 0.0
  %63 = vmatpush1.msra.mxu0 0.0
  %64 = vmatprep.subr.mxu0 0.0
  %65 = vmatpush1.msra.mxu0 0.0
  %66 = vmatprep.subr.mxu0 0.0
  %67 = vmatpush1.msra.mxu0 0.0
  %68 = vmatprep.subr.mxu0 0.0
  %69 = vmatpush1.msra.mxu0 0.0
  %70 = vmatprep.subr.mxu0 0.0
  %71 = vmatpush1.msra.mxu0 0.0
  %72 = vmatprep.subr.mxu0 0.0
  %73 = vmatpush1.msra.mxu0 0.0
  %74 = vmatprep.subr.mxu0 0.0
  %75 = vmatpush1.msra.mxu0 0.0
  %76 = vmatprep.subr.mxu0 0.0
  %77 = vmatpush1.msra.mxu0 0.0
  %78 = vmatprep.subr.mxu0 0.0
  %79 = vmatpush1.msra.mxu0 0.0
  %80 = vmatprep.subr.mxu0 0.0
  %81 = vmatpush1.msra.mxu0 0.0
  %82 = vmatprep.subr.mxu0 0.0
  %83 = vmatpush1.msra.mxu0 0.0
  %84 = vmatprep.mubr.f32.mxu0 0.0
  %85 = vmatmul.mubr.f32.gmra.mrb[0].mxu0 %v18
  %v86 = vpop.f32.mrb[0].mxu0
  %v87 = vadd.f32 0.0, %v86
  %v88 = vpop.f32.mrb[0].mxu0
  %89 = vdwg.mxu0
  %vm90 = vcmask 254976
  %91 = vst.msk [vmem:[%s2] sm:$0x3] %vm90, %v87
  // Predicated region
  $region10: #{_spectral_conv1d_forward.1} parent=0 // pred_check
    _
  $region11: #{_spectral_conv1d_forward.1} parent=0 // pred_check_branch
    %93 = sbr.rel (0) target = $region13
  $region12: #{_spectral_conv1d_forward.1} parent=0 // pred_region
    _
  $region13: #{_spectral_conv1d_forward.1} parent=0 // pred_fallthru
    _
  // Predicated region
  $region14: #{_spectral_conv1d_forward.1} parent=0 // pred_check
    _
  $region15: #{_spectral_conv1d_forward.1} parent=0 // pred_check_branch
    %95 = sbr.rel (0) target = $region17
  $region16: #{_spectral_conv1d_forward.1} parent=0 // pred_region
    _
  $region17: #{_spectral_conv1d_forward.1} parent=0 // pred_fallthru
    _

</llo_original>
